<compile_context>
chip_gen: v6e
topology: v6e:2x2x1
jax: 0.10.0
libtpu: 0.0.40
codegen_flags: <defaults>
</compile_context>

<pallas_src>
import numpy as np
import jax
import jax.numpy as jnp
from jax import lax
from jax.experimental import pallas as pl
from jax.experimental.pallas import tpu as pltpu


def _crf_viterbi_kernel(active_len_ref, feats_ref, trans_ref, mask_ref,
                        out_ref, bp_ref):
    # active_len_ref : (num_tiles,) i32 in SMEM  -- (last active step)+1 per tile
    # feats_ref      : (S, T, TB) f32            -- feats[t, j, b] (batch on lanes)
    # trans_ref      : (T, T, 1)  f32            -- transitions[i, j]
    # mask_ref       : (S, TB)    i32
    # out_ref        : (S, 1, TB) i32            -- decoded tag per (t, b)
    # bp_ref         : (S, T, TB) i32 scratch    -- back_points[t] = bp of step t+1
    S, T, TB = feats_ref.shape
    START, END = T - 2, T - 1

    mask = mask_ref[...]                                      # (S, TB)
    lengths = jnp.sum(mask, axis=0, keepdims=True)            # (1, TB)
    bound = active_len_ref[pl.program_id(0)]                  # scalar i32

    trans3 = trans_ref[...]                                   # (T, T, 1)
    # Hoisted lane-broadcast: trans_bc[i] is the (Tnext, TB) tile of trans[i, :].
    trans_bc = jnp.broadcast_to(trans3, (T, T, TB))

    # t = 0 : partition[j, b] = feats[0, b, j] + transitions[START, j]
    part0 = feats_ref[0] + trans_bc[START]                    # (T, TB)
    last0 = jnp.where(lengths == 1, part0, jnp.zeros_like(part0))

    def fwd_step(t, carry):
        part, last_part = carry
        # Fused max/argmax over previous tag i of (trans[i, j] + part[i, b]).
        # The emission is hoisted (constant over i -> same max index).
        best = trans_bc[0] + part[0:1, :]                     # (T, TB)
        best_idx = jnp.zeros((T, TB), jnp.int32)
        for i in range(1, T):
            cand = trans_bc[i] + part[i:i + 1, :]
            take = cand > best                                # strict > => first-index argmax
            best = jnp.where(take, cand, best)
            best_idx = jnp.where(take, i, best_idx)
        new_part = feats_ref[t] + best                        # (T, TB)
        mask_t = mask_ref[pl.ds(t, 1), :]                     # (1, TB)
        bp_ref[t - 1] = jnp.where(mask_t > 0, best_idx, 0)    # masked_fill_(~mask, 0)
        new_last = jnp.where(lengths - 1 == t, new_part, last_part)
        return new_part, new_last

    _, last_part = lax.fori_loop(1, bound, fwd_step, (part0, last0))

    # Backpointers past the last active step are all zeros (their mask is 0);
    # fill only the rows the bounded forward loop skipped.
    def zero_row(r, c):
        bp_ref[r] = jnp.zeros((T, TB), jnp.int32)
        return c
    lax.fori_loop(jnp.maximum(bound - 1, 0), S - 1, zero_row, 0)

    # Transition into END from the partition at position length-1:
    #   pointer0[b] = argmax_i (last_part[i, b] + trans[i, END])
    end_bc = trans_bc[:, END:END + 1, :]                      # (T, 1, TB)
    best_end = last_part[0:1, :] + end_bc[0]                  # (1, TB)
    ptr0 = jnp.zeros((1, TB), jnp.int32)
    for i in range(1, T):
        v = last_part[i:i + 1, :] + end_bc[i]
        take = v > best_end
        best_end = jnp.where(take, v, best_end)
        ptr0 = jnp.where(take, i, ptr0)

    # ---- back-trace: one decode row per step, O(S*TB) total ----
    tag_iota = lax.broadcasted_iota(jnp.int32, (T, TB), 0)
    out_ref[S - 1] = ptr0

    def back_step(k, ptr):
        idx = S - 2 - k
        bp = bp_ref[idx]                                      # (T, TB)
        # torch scatter_: at position length-1 the backpointer row is pointer0.
        bp_eff = jnp.where(lengths - 1 == idx, ptr0, bp)
        onehot = tag_iota == ptr
        new_ptr = jnp.sum(jnp.where(onehot, bp_eff, 0), axis=0, keepdims=True)
        out_ref[idx] = new_ptr
        return new_ptr

    lax.fori_loop(0, S - 1, back_step, ptr0)


def crf_viterbi_decode(feats, mask, transitions):
    """Viterbi decode. feats (B,S,T), mask (B,S), transitions (T,T).
    Returns best_path (B, S) int32."""
    B, S, T = feats.shape
    feats = feats.astype(jnp.float32)
    mask_i = mask.astype(jnp.int32)
    trans3 = transitions.astype(jnp.float32)[:, :, None]       # (T, T, 1)

    # Batch tile = lane dimension of every in-kernel tile. The lane block dim
    # must be 128-aligned or equal the full axis, so: full batch if B <= 128,
    # otherwise 128-wide tiles (padding B up to a multiple of 128).
    TB = B if B <= 128 else 128
    Bp = pl.cdiv(B, TB) * TB
    if Bp != B:
        feats = jnp.pad(feats, ((0, Bp - B), (0, 0), (0, 0)))
        mask_i = jnp.pad(mask_i, ((0, Bp - B), (0, 0)))

    # Batch goes on the last (lane) axis inside the kernel.
    feats_stb = jnp.transpose(feats, (1, 2, 0))                 # (S, T, Bp)
    mask_sb = jnp.transpose(mask_i, (1, 0))                     # (S, Bp)

    # Per-tile forward-loop bound: (last position with mask == 1) + 1.
    pos1 = jnp.arange(1, S + 1, dtype=jnp.int32)[None, :]       # (1, S)
    last_active = jnp.max(mask_i * pos1, axis=1)                # (Bp,)
    active_len = jnp.max(last_active.reshape(Bp // TB, TB), axis=1).astype(jnp.int32)

    grid_spec = pltpu.PrefetchScalarGridSpec(
        num_scalar_prefetch=1,
        grid=(Bp // TB,),
        in_specs=[
            pl.BlockSpec((S, T, TB), lambda i, al: (0, 0, i)),
            pl.BlockSpec((T, T, 1), lambda i, al: (0, 0, 0)),
            pl.BlockSpec((S, TB), lambda i, al: (0, i)),
        ],
        out_specs=pl.BlockSpec((S, 1, TB), lambda i, al: (0, 0, i)),
        scratch_shapes=[pltpu.VMEM((S, T, TB), jnp.int32)],
    )

    dec = pl.pallas_call(
        _crf_viterbi_kernel,
        out_shape=jax.ShapeDtypeStruct((S, 1, Bp), jnp.int32),
        grid_spec=grid_spec,
        compiler_params=pltpu.CompilerParams(
            dimension_semantics=("parallel",)),
    )(active_len, feats_stb, trans3, mask_sb)                   # (S, 1, Bp)

    return jnp.transpose(dec[:, 0, :], (1, 0))[:B]              # (B, S)


def crf_forward(feats, mask, transitions):
    """Mirrors CRF.forward: returns (path_score, best_path)."""
    best_path = crf_viterbi_decode(feats, mask, transitions)
    # path_score is None in the reference _viterbi_decode too.
    return None, best_path


def init_crf_transitions(target_size, key):
    """Transitions per the module's __init__ (plus small deterministic 'learned'
    values so the decode is non-trivial)."""
    T = target_size + 2
    trans = 0.1 * jax.random.normal(key, (T, T), jnp.float32)
    trans = trans.at[:, T - 2].set(-10000.0)   # column START_TAG
    trans = trans.at[T - 1, :].set(-10000.0)   # row END_TAG
    return trans


def _viterbi_ref(feats, mask, trans):
    """Pure NumPy reference of CRF._viterbi_decode (emission hoisted out of the
    per-step max -- mathematically the same recurrence, since the emission is
    constant over the previous-tag axis)."""
    feats = np.asarray(feats, np.float32)
    mask = np.asarray(mask).astype(np.int64)
    trans = np.asarray(trans, np.float32)
    B, S, T = feats.shape
    lengths = mask.sum(axis=1)

    partition = feats[:, 0, :] + trans[T - 2][None, :]
    part_hist = [partition]
    bps = []
    for t in range(1, S):
        scores = trans[None, :, :] + partition[:, :, None]      # (B, Tprev, Tnext)
        m = scores.max(axis=1)
        bp = scores.argmax(axis=1)
        partition = feats[:, t, :] + m
        bp = np.where(mask[:, t:t + 1] > 0, bp, 0)
        part_hist.append(partition)
        bps.append(bp)
    part_hist = np.stack(part_hist, axis=1)                     # (B, S, T)
    last_part = part_hist[np.arange(B), lengths - 1, :]         # (B, T)
    last_values = last_part[:, :, None] + trans[None, :, :]
    pointer = last_values.argmax(axis=1)[:, T - 1]
    bps.append(np.zeros((B, T), np.int64))
    bps = np.stack(bps, axis=0)                                 # (S, B, T)
    for b in range(B):
        bps[lengths[b] - 1, b, :] = pointer[b]
    decode = np.zeros((S, B), np.int64)
    decode[S - 1] = pointer
    for idx in range(S - 2, -1, -1):
        pointer = bps[idx, np.arange(B), pointer]
        decode[idx] = pointer
    return decode.T                                             # (B, S)


if __name__ == "__main__":
    key = jax.random.PRNGKey(0)
    k_feat, k_trans = jax.random.split(key, 2)

    B, S, target_size = 2, 8, 6
    T = target_size + 2

    feats = jax.random.normal(k_feat, (B, S, T), jnp.float32)
    lengths = jnp.array([8, 5], dtype=jnp.int32)                # second sequence padded
    mask = (jnp.arange(S)[None, :] < lengths[:, None]).astype(jnp.int32)
    transitions = init_crf_transitions(target_size, k_trans)

    path_score, best_path = crf_forward(feats, mask, transitions)
    best_path = jax.block_until_ready(best_path)

    ref = _viterbi_ref(feats, mask, transitions)
    assert np.array_equal(np.asarray(best_path), ref), (np.asarray(best_path), ref)
    assert path_score is None
    print("KERNEL_OK")
</pallas_src>

<mosaic_0001>
module attributes {stable_mosaic.version = 11 : i64} {
  func.func @_crf_viterbi_kernel(%arg0: i32, %arg1: memref<1xi32, #tpu.memory_space<smem>>, %arg2: memref<8x8x2xf32, #tpu.memory_space<vmem>>, %arg3: memref<8x8x1xf32, #tpu.memory_space<vmem>>, %arg4: memref<8x2xi32, #tpu.memory_space<vmem>>, %arg5: memref<8x1x2xi32, #tpu.memory_space<vmem>>, %arg6: memref<8x8x2xi32, #tpu.memory_space<vmem>>) attributes {dimension_semantics = [#tpu.dimension_semantics<parallel>], iteration_bounds = array<i64: 1>, scalar_prefetch = 1 : i64, scratch_operands = 1 : i64, tpu.core_type = #tpu.core_type<tc>, window_params = [{transform_indices = @transform_0, window_bounds = array<i64: 8, 8, 2>}, {pipeline_mode = #tpu.pipeline_mode<synchronous>, transform_indices = @transform_1, window_bounds = array<i64: 8, 8, 1>}, {transform_indices = @transform_2, window_bounds = array<i64: 8, 2>}, {transform_indices = @transform_3, window_bounds = array<i64: 8, 1, 2>}]} {
    %c0 = arith.constant 0 : index
    %c0_0 = arith.constant 0 : index
    %0 = vector.load %arg4[%c0, %c0_0] : memref<8x2xi32, #tpu.memory_space<vmem>>, vector<8x2xi32>
    %cst = arith.constant dense<0> : vector<2xi32>
    %1 = vector.multi_reduction <add>, %0, %cst [0] : vector<8x2xi32> to vector<2xi32>
    %2 = vector.shape_cast %1 : vector<2xi32> to vector<1x2xi32>
    %3 = arith.index_cast %arg0 : i32 to index
    %4 = memref.load %arg1[%3] : memref<1xi32, #tpu.memory_space<smem>>
    %c0_1 = arith.constant 0 : index
    %c0_2 = arith.constant 0 : index
    %c0_3 = arith.constant 0 : index
    %5 = vector.load %arg3[%c0_1, %c0_2, %c0_3] : memref<8x8x1xf32, #tpu.memory_space<vmem>>, vector<8x8x1xf32>
    %6 = vector.shape_cast %5 : vector<8x8x1xf32> to vector<8x8x1xf32>
    %7 = vector.broadcast %6 : vector<8x8x1xf32> to vector<8x8x2xf32>
    %c0_4 = arith.constant 0 : index
    %c0_5 = arith.constant 0 : index
    %c0_6 = arith.constant 0 : index
    %8 = vector.load %arg2[%c0_4, %c0_5, %c0_6] : memref<8x8x2xf32, #tpu.memory_space<vmem>>, vector<1x8x2xf32>
    %9 = vector.shape_cast %8 : vector<1x8x2xf32> to vector<8x2xf32>
    %10 = vector.extract_strided_slice %7 {offsets = [6, 0, 0], sizes = [1, 8, 2], strides = [1, 1, 1]} : vector<8x8x2xf32> to vector<1x8x2xf32>
    %11 = vector.shape_cast %10 : vector<1x8x2xf32> to vector<8x2xf32>
    %12 = arith.addf %9, %11 : vector<8x2xf32>
    %c1_i32 = arith.constant 1 : i32
    %13 = vector.broadcast %c1_i32 : i32 to vector<1x2xi32>
    %14 = arith.cmpi eq, %2, %13 : vector<1x2xi32>
    %cst_7 = arith.constant 0.000000e+00 : f32
    %15 = vector.broadcast %cst_7 : f32 to vector<8x2xf32>
    %16 = vector.shape_cast %14 : vector<1x2xi1> to vector<1x2xi1>
    %17 = vector.broadcast %16 : vector<1x2xi1> to vector<8x2xi1>
    %18 = arith.select %17, %12, %15 : vector<8x2xi1>, vector<8x2xf32>
    %c1_i32_8 = arith.constant 1 : i32
    %19 = arith.subi %4, %c1_i32_8 : i32
    %20 = arith.addi %c1_i32_8, %19 : i32
    %c1_i32_9 = arith.constant 1 : i32
    %21:2 = scf.for %arg7 = %c1_i32_8 to %20 step %c1_i32_9 iter_args(%arg8 = %12, %arg9 = %18) -> (vector<8x2xf32>, vector<8x2xf32>)  : i32 {
      %93 = vector.extract_strided_slice %7 {offsets = [0, 0, 0], sizes = [1, 8, 2], strides = [1, 1, 1]} : vector<8x8x2xf32> to vector<1x8x2xf32>
      %94 = vector.shape_cast %93 : vector<1x8x2xf32> to vector<8x2xf32>
      %95 = vector.extract_strided_slice %arg8 {offsets = [0, 0], sizes = [1, 2], strides = [1, 1]} : vector<8x2xf32> to vector<1x2xf32>
      %96 = vector.broadcast %95 : vector<1x2xf32> to vector<8x2xf32>
      %97 = arith.addf %94, %96 : vector<8x2xf32>
      %c0_i32_22 = arith.constant 0 : i32
      %98 = vector.broadcast %c0_i32_22 : i32 to vector<8x2xi32>
      %99 = vector.extract_strided_slice %7 {offsets = [1, 0, 0], sizes = [1, 8, 2], strides = [1, 1, 1]} : vector<8x8x2xf32> to vector<1x8x2xf32>
      %100 = vector.shape_cast %99 : vector<1x8x2xf32> to vector<8x2xf32>
      %101 = vector.extract_strided_slice %arg8 {offsets = [1, 0], sizes = [1, 2], strides = [1, 1]} : vector<8x2xf32> to vector<1x2xf32>
      %102 = vector.broadcast %101 : vector<1x2xf32> to vector<8x2xf32>
      %103 = arith.addf %100, %102 : vector<8x2xf32>
      %104 = arith.cmpf ogt, %103, %97 : vector<8x2xf32>
      %105 = arith.select %104, %103, %97 : vector<8x2xi1>, vector<8x2xf32>
      %c1_i32_23 = arith.constant 1 : i32
      %106 = vector.broadcast %c1_i32_23 : i32 to vector<8x2xi32>
      %107 = arith.select %104, %106, %98 : vector<8x2xi1>, vector<8x2xi32>
      %108 = vector.extract_strided_slice %7 {offsets = [2, 0, 0], sizes = [1, 8, 2], strides = [1, 1, 1]} : vector<8x8x2xf32> to vector<1x8x2xf32>
      %109 = vector.shape_cast %108 : vector<1x8x2xf32> to vector<8x2xf32>
      %110 = vector.extract_strided_slice %arg8 {offsets = [2, 0], sizes = [1, 2], strides = [1, 1]} : vector<8x2xf32> to vector<1x2xf32>
      %111 = vector.broadcast %110 : vector<1x2xf32> to vector<8x2xf32>
      %112 = arith.addf %109, %111 : vector<8x2xf32>
      %113 = arith.cmpf ogt, %112, %105 : vector<8x2xf32>
      %114 = arith.select %113, %112, %105 : vector<8x2xi1>, vector<8x2xf32>
      %c2_i32_24 = arith.constant 2 : i32
      %115 = vector.broadcast %c2_i32_24 : i32 to vector<8x2xi32>
      %116 = arith.select %113, %115, %107 : vector<8x2xi1>, vector<8x2xi32>
      %117 = vector.extract_strided_slice %7 {offsets = [3, 0, 0], sizes = [1, 8, 2], strides = [1, 1, 1]} : vector<8x8x2xf32> to vector<1x8x2xf32>
      %118 = vector.shape_cast %117 : vector<1x8x2xf32> to vector<8x2xf32>
      %119 = vector.extract_strided_slice %arg8 {offsets = [3, 0], sizes = [1, 2], strides = [1, 1]} : vector<8x2xf32> to vector<1x2xf32>
      %120 = vector.broadcast %119 : vector<1x2xf32> to vector<8x2xf32>
      %121 = arith.addf %118, %120 : vector<8x2xf32>
      %122 = arith.cmpf ogt, %121, %114 : vector<8x2xf32>
      %123 = arith.select %122, %121, %114 : vector<8x2xi1>, vector<8x2xf32>
      %c3_i32_25 = arith.constant 3 : i32
      %124 = vector.broadcast %c3_i32_25 : i32 to vector<8x2xi32>
      %125 = arith.select %122, %124, %116 : vector<8x2xi1>, vector<8x2xi32>
      %126 = vector.extract_strided_slice %7 {offsets = [4, 0, 0], sizes = [1, 8, 2], strides = [1, 1, 1]} : vector<8x8x2xf32> to vector<1x8x2xf32>
      %127 = vector.shape_cast %126 : vector<1x8x2xf32> to vector<8x2xf32>
      %128 = vector.extract_strided_slice %arg8 {offsets = [4, 0], sizes = [1, 2], strides = [1, 1]} : vector<8x2xf32> to vector<1x2xf32>
      %129 = vector.broadcast %128 : vector<1x2xf32> to vector<8x2xf32>
      %130 = arith.addf %127, %129 : vector<8x2xf32>
      %131 = arith.cmpf ogt, %130, %123 : vector<8x2xf32>
      %132 = arith.select %131, %130, %123 : vector<8x2xi1>, vector<8x2xf32>
      %c4_i32_26 = arith.constant 4 : i32
      %133 = vector.broadcast %c4_i32_26 : i32 to vector<8x2xi32>
      %134 = arith.select %131, %133, %125 : vector<8x2xi1>, vector<8x2xi32>
      %135 = vector.extract_strided_slice %7 {offsets = [5, 0, 0], sizes = [1, 8, 2], strides = [1, 1, 1]} : vector<8x8x2xf32> to vector<1x8x2xf32>
      %136 = vector.shape_cast %135 : vector<1x8x2xf32> to vector<8x2xf32>
      %137 = vector.extract_strided_slice %arg8 {offsets = [5, 0], sizes = [1, 2], strides = [1, 1]} : vector<8x2xf32> to vector<1x2xf32>
      %138 = vector.broadcast %137 : vector<1x2xf32> to vector<8x2xf32>
      %139 = arith.addf %136, %138 : vector<8x2xf32>
      %140 = arith.cmpf ogt, %139, %132 : vector<8x2xf32>
      %141 = arith.select %140, %139, %132 : vector<8x2xi1>, vector<8x2xf32>
      %c5_i32_27 = arith.constant 5 : i32
      %142 = vector.broadcast %c5_i32_27 : i32 to vector<8x2xi32>
      %143 = arith.select %140, %142, %134 : vector<8x2xi1>, vector<8x2xi32>
      %144 = vector.extract_strided_slice %7 {offsets = [6, 0, 0], sizes = [1, 8, 2], strides = [1, 1, 1]} : vector<8x8x2xf32> to vector<1x8x2xf32>
      %145 = vector.shape_cast %144 : vector<1x8x2xf32> to vector<8x2xf32>
      %146 = vector.extract_strided_slice %arg8 {offsets = [6, 0], sizes = [1, 2], strides = [1, 1]} : vector<8x2xf32> to vector<1x2xf32>
      %147 = vector.broadcast %146 : vector<1x2xf32> to vector<8x2xf32>
      %148 = arith.addf %145, %147 : vector<8x2xf32>
      %149 = arith.cmpf ogt, %148, %141 : vector<8x2xf32>
      %150 = arith.select %149, %148, %141 : vector<8x2xi1>, vector<8x2xf32>
      %c6_i32_28 = arith.constant 6 : i32
      %151 = vector.broadcast %c6_i32_28 : i32 to vector<8x2xi32>
      %152 = arith.select %149, %151, %143 : vector<8x2xi1>, vector<8x2xi32>
      %153 = vector.extract_strided_slice %7 {offsets = [7, 0, 0], sizes = [1, 8, 2], strides = [1, 1, 1]} : vector<8x8x2xf32> to vector<1x8x2xf32>
      %154 = vector.shape_cast %153 : vector<1x8x2xf32> to vector<8x2xf32>
      %155 = vector.extract_strided_slice %arg8 {offsets = [7, 0], sizes = [1, 2], strides = [1, 1]} : vector<8x2xf32> to vector<1x2xf32>
      %156 = vector.broadcast %155 : vector<1x2xf32> to vector<8x2xf32>
      %157 = arith.addf %154, %156 : vector<8x2xf32>
      %158 = arith.cmpf ogt, %157, %150 : vector<8x2xf32>
      %159 = arith.select %158, %157, %150 : vector<8x2xi1>, vector<8x2xf32>
      %c7_i32_29 = arith.constant 7 : i32
      %160 = vector.broadcast %c7_i32_29 : i32 to vector<8x2xi32>
      %161 = arith.select %158, %160, %152 : vector<8x2xi1>, vector<8x2xi32>
      %162 = arith.index_cast %arg7 : i32 to index
      %c0_30 = arith.constant 0 : index
      %c0_31 = arith.constant 0 : index
      %163 = vector.load %arg2[%162, %c0_30, %c0_31] : memref<8x8x2xf32, #tpu.memory_space<vmem>>, vector<1x8x2xf32>
      %164 = vector.shape_cast %163 : vector<1x8x2xf32> to vector<8x2xf32>
      %165 = arith.addf %164, %159 : vector<8x2xf32>
      %166 = arith.index_cast %arg7 : i32 to index
      %c0_32 = arith.constant 0 : index
      %167 = vector.load %arg4[%166, %c0_32] : memref<8x2xi32, #tpu.memory_space<vmem>>, vector<1x2xi32>
      %c0_i32_33 = arith.constant 0 : i32
      %168 = vector.broadcast %c0_i32_33 : i32 to vector<1x2xi32>
      %169 = arith.cmpi sgt, %167, %168 : vector<1x2xi32>
      %c0_i32_34 = arith.constant 0 : i32
      %170 = vector.shape_cast %169 : vector<1x2xi1> to vector<1x2xi1>
      %171 = vector.broadcast %170 : vector<1x2xi1> to vector<8x2xi1>
      %172 = vector.broadcast %c0_i32_34 : i32 to vector<8x2xi32>
      %173 = arith.select %171, %161, %172 : vector<8x2xi1>, vector<8x2xi32>
      %c1_i32_35 = arith.constant 1 : i32
      %174 = arith.subi %arg7, %c1_i32_35 : i32
      %175 = arith.index_cast %174 : i32 to index
      %c0_36 = arith.constant 0 : index
      %c0_37 = arith.constant 0 : index
      %176 = vector.load %arg6[%175, %c0_36, %c0_37] : memref<8x8x2xi32, #tpu.memory_space<vmem>>, vector<1x8x2xi32>
      %177 = vector.shape_cast %176 : vector<1x8x2xi32> to vector<8x2xi32>
      %178 = vector.shape_cast %173 : vector<8x2xi32> to vector<1x8x2xi32>
      tpu.vector_store %arg6[%175, %c0_36, %c0_37], %178 {strides = array<i32>} : memref<8x8x2xi32, #tpu.memory_space<vmem>>, vector<1x8x2xi32>,
      %c1_i32_38 = arith.constant 1 : i32
      %179 = vector.broadcast %c1_i32_38 : i32 to vector<1x2xi32>
      %180 = arith.subi %2, %179 : vector<1x2xi32>
      %181 = vector.broadcast %arg7 : i32 to vector<1x2xi32>
      %182 = arith.cmpi eq, %180, %181 : vector<1x2xi32>
      %183 = vector.shape_cast %182 : vector<1x2xi1> to vector<1x2xi1>
      %184 = vector.broadcast %183 : vector<1x2xi1> to vector<8x2xi1>
      %185 = arith.select %184, %165, %arg9 : vector<8x2xi1>, vector<8x2xf32>
      scf.yield %165, %185 : vector<8x2xf32>, vector<8x2xf32>
    }
    %c1_i32_10 = arith.constant 1 : i32
    %22 = arith.subi %4, %c1_i32_10 : i32
    %c0_i32 = arith.constant 0 : i32
    %23 = arith.maxsi %22, %c0_i32 : i32
    %c0_i32_11 = arith.constant 0 : i32
    %c7_i32 = arith.constant 7 : i32
    %24 = arith.subi %c7_i32, %23 : i32
    %25 = arith.addi %23, %24 : i32
    %c1_i32_12 = arith.constant 1 : i32
    scf.for %arg7 = %23 to %25 step %c1_i32_12  : i32 {
      %c0_i32_22 = arith.constant 0 : i32
      %93 = vector.broadcast %c0_i32_22 : i32 to vector<8x2xi32>
      %94 = arith.index_cast %arg7 : i32 to index
      %c0_23 = arith.constant 0 : index
      %c0_24 = arith.constant 0 : index
      %95 = vector.load %arg6[%94, %c0_23, %c0_24] : memref<8x8x2xi32, #tpu.memory_space<vmem>>, vector<1x8x2xi32>
      %96 = vector.shape_cast %95 : vector<1x8x2xi32> to vector<8x2xi32>
      %97 = vector.shape_cast %93 : vector<8x2xi32> to vector<1x8x2xi32>
      tpu.vector_store %arg6[%94, %c0_23, %c0_24], %97 {strides = array<i32>} : memref<8x8x2xi32, #tpu.memory_space<vmem>>, vector<1x8x2xi32>,
    }
    %26 = vector.extract_strided_slice %7 {offsets = [0, 7, 0], sizes = [8, 1, 2], strides = [1, 1, 1]} : vector<8x8x2xf32> to vector<8x1x2xf32>
    %27 = vector.extract_strided_slice %21#1 {offsets = [0, 0], sizes = [1, 2], strides = [1, 1]} : vector<8x2xf32> to vector<1x2xf32>
    %28 = vector.extract_strided_slice %26 {offsets = [0, 0, 0], sizes = [1, 1, 2], strides = [1, 1, 1]} : vector<8x1x2xf32> to vector<1x1x2xf32>
    %29 = vector.shape_cast %28 : vector<1x1x2xf32> to vector<1x2xf32>
    %30 = arith.addf %27, %29 : vector<1x2xf32>
    %c0_i32_13 = arith.constant 0 : i32
    %31 = vector.broadcast %c0_i32_13 : i32 to vector<1x2xi32>
    %32 = vector.extract_strided_slice %21#1 {offsets = [1, 0], sizes = [1, 2], strides = [1, 1]} : vector<8x2xf32> to vector<1x2xf32>
    %33 = vector.extract_strided_slice %26 {offsets = [1, 0, 0], sizes = [1, 1, 2], strides = [1, 1, 1]} : vector<8x1x2xf32> to vector<1x1x2xf32>
    %34 = vector.shape_cast %33 : vector<1x1x2xf32> to vector<1x2xf32>
    %35 = arith.addf %32, %34 : vector<1x2xf32>
    %36 = arith.cmpf ogt, %35, %30 : vector<1x2xf32>
    %37 = arith.select %36, %35, %30 : vector<1x2xi1>, vector<1x2xf32>
    %c1_i32_14 = arith.constant 1 : i32
    %38 = vector.broadcast %c1_i32_14 : i32 to vector<1x2xi32>
    %39 = arith.select %36, %38, %31 : vector<1x2xi1>, vector<1x2xi32>
    %40 = vector.extract_strided_slice %21#1 {offsets = [2, 0], sizes = [1, 2], strides = [1, 1]} : vector<8x2xf32> to vector<1x2xf32>
    %41 = vector.extract_strided_slice %26 {offsets = [2, 0, 0], sizes = [1, 1, 2], strides = [1, 1, 1]} : vector<8x1x2xf32> to vector<1x1x2xf32>
    %42 = vector.shape_cast %41 : vector<1x1x2xf32> to vector<1x2xf32>
    %43 = arith.addf %40, %42 : vector<1x2xf32>
    %44 = arith.cmpf ogt, %43, %37 : vector<1x2xf32>
    %45 = arith.select %44, %43, %37 : vector<1x2xi1>, vector<1x2xf32>
    %c2_i32 = arith.constant 2 : i32
    %46 = vector.broadcast %c2_i32 : i32 to vector<1x2xi32>
    %47 = arith.select %44, %46, %39 : vector<1x2xi1>, vector<1x2xi32>
    %48 = vector.extract_strided_slice %21#1 {offsets = [3, 0], sizes = [1, 2], strides = [1, 1]} : vector<8x2xf32> to vector<1x2xf32>
    %49 = vector.extract_strided_slice %26 {offsets = [3, 0, 0], sizes = [1, 1, 2], strides = [1, 1, 1]} : vector<8x1x2xf32> to vector<1x1x2xf32>
    %50 = vector.shape_cast %49 : vector<1x1x2xf32> to vector<1x2xf32>
    %51 = arith.addf %48, %50 : vector<1x2xf32>
    %52 = arith.cmpf ogt, %51, %45 : vector<1x2xf32>
    %53 = arith.select %52, %51, %45 : vector<1x2xi1>, vector<1x2xf32>
    %c3_i32 = arith.constant 3 : i32
    %54 = vector.broadcast %c3_i32 : i32 to vector<1x2xi32>
    %55 = arith.select %52, %54, %47 : vector<1x2xi1>, vector<1x2xi32>
    %56 = vector.extract_strided_slice %21#1 {offsets = [4, 0], sizes = [1, 2], strides = [1, 1]} : vector<8x2xf32> to vector<1x2xf32>
    %57 = vector.extract_strided_slice %26 {offsets = [4, 0, 0], sizes = [1, 1, 2], strides = [1, 1, 1]} : vector<8x1x2xf32> to vector<1x1x2xf32>
    %58 = vector.shape_cast %57 : vector<1x1x2xf32> to vector<1x2xf32>
    %59 = arith.addf %56, %58 : vector<1x2xf32>
    %60 = arith.cmpf ogt, %59, %53 : vector<1x2xf32>
    %61 = arith.select %60, %59, %53 : vector<1x2xi1>, vector<1x2xf32>
    %c4_i32 = arith.constant 4 : i32
    %62 = vector.broadcast %c4_i32 : i32 to vector<1x2xi32>
    %63 = arith.select %60, %62, %55 : vector<1x2xi1>, vector<1x2xi32>
    %64 = vector.extract_strided_slice %21#1 {offsets = [5, 0], sizes = [1, 2], strides = [1, 1]} : vector<8x2xf32> to vector<1x2xf32>
    %65 = vector.extract_strided_slice %26 {offsets = [5, 0, 0], sizes = [1, 1, 2], strides = [1, 1, 1]} : vector<8x1x2xf32> to vector<1x1x2xf32>
    %66 = vector.shape_cast %65 : vector<1x1x2xf32> to vector<1x2xf32>
    %67 = arith.addf %64, %66 : vector<1x2xf32>
    %68 = arith.cmpf ogt, %67, %61 : vector<1x2xf32>
    %69 = arith.select %68, %67, %61 : vector<1x2xi1>, vector<1x2xf32>
    %c5_i32 = arith.constant 5 : i32
    %70 = vector.broadcast %c5_i32 : i32 to vector<1x2xi32>
    %71 = arith.select %68, %70, %63 : vector<1x2xi1>, vector<1x2xi32>
    %72 = vector.extract_strided_slice %21#1 {offsets = [6, 0], sizes = [1, 2], strides = [1, 1]} : vector<8x2xf32> to vector<1x2xf32>
    %73 = vector.extract_strided_slice %26 {offsets = [6, 0, 0], sizes = [1, 1, 2], strides = [1, 1, 1]} : vector<8x1x2xf32> to vector<1x1x2xf32>
    %74 = vector.shape_cast %73 : vector<1x1x2xf32> to vector<1x2xf32>
    %75 = arith.addf %72, %74 : vector<1x2xf32>
    %76 = arith.cmpf ogt, %75, %69 : vector<1x2xf32>
    %77 = arith.select %76, %75, %69 : vector<1x2xi1>, vector<1x2xf32>
    %c6_i32 = arith.constant 6 : i32
    %78 = vector.broadcast %c6_i32 : i32 to vector<1x2xi32>
    %79 = arith.select %76, %78, %71 : vector<1x2xi1>, vector<1x2xi32>
    %80 = vector.extract_strided_slice %21#1 {offsets = [7, 0], sizes = [1, 2], strides = [1, 1]} : vector<8x2xf32> to vector<1x2xf32>
    %81 = vector.extract_strided_slice %26 {offsets = [7, 0, 0], sizes = [1, 1, 2], strides = [1, 1, 1]} : vector<8x1x2xf32> to vector<1x1x2xf32>
    %82 = vector.shape_cast %81 : vector<1x1x2xf32> to vector<1x2xf32>
    %83 = arith.addf %80, %82 : vector<1x2xf32>
    %84 = arith.cmpf ogt, %83, %77 : vector<1x2xf32>
    %c7_i32_15 = arith.constant 7 : i32
    %85 = vector.broadcast %c7_i32_15 : i32 to vector<1x2xi32>
    %86 = arith.select %84, %85, %79 : vector<1x2xi1>, vector<1x2xi32>
    %87 = tpu.iota {dimensions = array<i32: 0>} : vector<8x2xi32>
    %c7 = arith.constant 7 : index
    %c0_16 = arith.constant 0 : index
    %c0_17 = arith.constant 0 : index
    %88 = vector.load %arg5[%c7, %c0_16, %c0_17] : memref<8x1x2xi32, #tpu.memory_space<vmem>>, vector<1x1x2xi32>
    %89 = vector.shape_cast %88 : vector<1x1x2xi32> to vector<1x2xi32>
    %90 = vector.shape_cast %86 : vector<1x2xi32> to vector<1x1x2xi32>
    tpu.vector_store %arg5[%c7, %c0_16, %c0_17], %90 {strides = array<i32>} : memref<8x1x2xi32, #tpu.memory_space<vmem>>, vector<1x1x2xi32>,
    %c0_i32_18 = arith.constant 0 : i32
    %c7_i32_19 = arith.constant 7 : i32
    %91 = arith.addi %c0_i32_18, %c7_i32_19 : i32
    %c1_i32_20 = arith.constant 1 : i32
    %92 = scf.for %arg7 = %c0_i32_18 to %91 step %c1_i32_20 iter_args(%arg8 = %86) -> (vector<1x2xi32>)  : i32 {
      %c6_i32_22 = arith.constant 6 : i32
      %93 = arith.subi %c6_i32_22, %arg7 : i32
      %94 = arith.index_cast %93 : i32 to index
      %c0_23 = arith.constant 0 : index
      %c0_24 = arith.constant 0 : index
      %95 = vector.load %arg6[%94, %c0_23, %c0_24] : memref<8x8x2xi32, #tpu.memory_space<vmem>>, vector<1x8x2xi32>
      %96 = vector.shape_cast %95 : vector<1x8x2xi32> to vector<8x2xi32>
      %c1_i32_25 = arith.constant 1 : i32
      %97 = vector.broadcast %c1_i32_25 : i32 to vector<1x2xi32>
      %98 = arith.subi %2, %97 : vector<1x2xi32>
      %99 = vector.broadcast %93 : i32 to vector<1x2xi32>
      %100 = arith.cmpi eq, %98, %99 : vector<1x2xi32>
      %101 = vector.shape_cast %100 : vector<1x2xi1> to vector<1x2xi1>
      %102 = vector.broadcast %101 : vector<1x2xi1> to vector<8x2xi1>
      %103 = vector.shape_cast %86 : vector<1x2xi32> to vector<1x2xi32>
      %104 = vector.broadcast %103 : vector<1x2xi32> to vector<8x2xi32>
      %105 = arith.select %102, %104, %96 : vector<8x2xi1>, vector<8x2xi32>
      %106 = vector.broadcast %arg8 : vector<1x2xi32> to vector<8x2xi32>
      %107 = arith.cmpi eq, %87, %106 : vector<8x2xi32>
      %c0_i32_26 = arith.constant 0 : i32
      %108 = vector.broadcast %c0_i32_26 : i32 to vector<8x2xi32>
      %109 = arith.select %107, %105, %108 : vector<8x2xi1>, vector<8x2xi32>
      %cst_27 = arith.constant dense<0> : vector<2xi32>
      %110 = vector.multi_reduction <add>, %109, %cst_27 [0] : vector<8x2xi32> to vector<2xi32>
      %111 = vector.shape_cast %110 : vector<2xi32> to vector<1x2xi32>
      %112 = arith.index_cast %93 : i32 to index
      %c0_28 = arith.constant 0 : index
      %c0_29 = arith.constant 0 : index
      %113 = vector.load %arg5[%112, %c0_28, %c0_29] : memref<8x1x2xi32, #tpu.memory_space<vmem>>, vector<1x1x2xi32>
      %114 = vector.shape_cast %113 : vector<1x1x2xi32> to vector<1x2xi32>
      %115 = vector.shape_cast %111 : vector<1x2xi32> to vector<1x1x2xi32>
      tpu.vector_store %arg5[%112, %c0_28, %c0_29], %115 {strides = array<i32>} : memref<8x1x2xi32, #tpu.memory_space<vmem>>, vector<1x1x2xi32>,
      scf.yield %111 : vector<1x2xi32>
    }
    %c7_i32_21 = arith.constant 7 : i32
    return
  }
  func.func @transform_0(%arg0: i32, %arg1: memref<1xi32, #tpu.memory_space<smem>>) -> (i32, i32, i32) {
    %c0_i32 = arith.constant 0 : i32
    %c0_i32_0 = arith.constant 0 : i32
    %c0_i32_1 = arith.constant 0 : i32
    return %c0_i32, %c0_i32_0, %arg0 : i32, i32, i32
  }
  func.func @transform_1(%arg0: i32, %arg1: memref<1xi32, #tpu.memory_space<smem>>) -> (i32, i32, i32) {
    %c0_i32 = arith.constant 0 : i32
    %c0_i32_0 = arith.constant 0 : i32
    %c0_i32_1 = arith.constant 0 : i32
    %c0_i32_2 = arith.constant 0 : i32
    return %c0_i32, %c0_i32_0, %c0_i32_1 : i32, i32, i32
  }
  func.func @transform_2(%arg0: i32, %arg1: memref<1xi32, #tpu.memory_space<smem>>) -> (i32, i32) {
    %c0_i32 = arith.constant 0 : i32
    %c0_i32_0 = arith.constant 0 : i32
    return %c0_i32, %arg0 : i32, i32
  }
  func.func @transform_3(%arg0: i32, %arg1: memref<1xi32, #tpu.memory_space<smem>>) -> (i32, i32, i32) {
    %c0_i32 = arith.constant 0 : i32
    %c0_i32_0 = arith.constant 0 : i32
    %c0_i32_1 = arith.constant 0 : i32
    return %c0_i32, %c0_i32_0, %arg0 : i32, i32, i32
  }
}

</mosaic_0001>

<llo_original>
// kernel: tpu_custom_call.1
$region0: #{tpu_custom_call.1}
  #allocation0 [shape = 'u32[]', space=smem, size = 0x4, offset = 0x4, fixed_abs, tag = 'smem constant byte address 0x4 - core index']
  #allocation1 [shape = 'u32[144,128]{1,0:T(1,128)}', space=vmem, size = 0x12000, scoped, tag = 'internal scratch']
  #allocation2 [shape = 's32[8,8,2]{2,1,0:T(8,128)}', space=vmem, size = 0x8000, scoped, tag = 'scratch operand']
  #allocation3 [shape = 's32[1]{0}', space=sflag, size = 0x4, scoped, tag = 'scoped memory for tpu_custom_call.1']
  #allocation4 [shape = 's32[1]{0:T(128)S(6)}', space=smem, size = 0x200, scoped, tag = 'prefetched SMEM operand 0']
  %s0 = inlined_call_operand.<no memory space> [shape: s32[1], index: 0, kind: input, shape index: {}]
  %s1 = inlined_call_operand.vmem [shape: f32[8,8,2], index: 1, kind: input, shape index: {}]
  %s2 = inlined_call_operand.vmem [shape: f32[8,8,1], index: 2, kind: input, shape index: {}]
  %s3 = inlined_call_operand.vmem [shape: s32[8,2], index: 3, kind: input, shape index: {}]
  %s4 = inlined_call_operand.vmem [shape: s32[8,1,2], index: 4, kind: output, shape index: {}]
  %s5 = sld [smem:[#allocation0]]
  $region43: #{tpu_custom_call.1} parent=0
    _
  %s7 = ssub.s32 1, %s5
  %s8 = scalar_select 0, %s7, %s5
  %9 = sst [smem:[#allocation4]] %s0
  // Predicated region
  $region2: #{tpu_custom_call.1} parent=0 // pred_check
    _
  $region3: #{tpu_custom_call.1} parent=0 // pred_check_branch
    %11 = sbr.rel (0) target = $region5
  $region4: #{tpu_custom_call.1} parent=0 // pred_region
    _
  $region5: #{tpu_custom_call.1} parent=0 // pred_fallthru
    _
  // Predicated region
  $region6: #{tpu_custom_call.1} parent=0 // pred_check
    _
  $region7: #{tpu_custom_call.1} parent=0 // pred_check_branch
    %13 = sbr.rel (0) target = $region9
  $region8: #{tpu_custom_call.1} parent=0 // pred_region
    _
  $region9: #{tpu_custom_call.1} parent=0 // pred_fallthru
    _
  // Predicated region
  $region10: #{tpu_custom_call.1} parent=0 // pred_check
    _
  $region11: #{tpu_custom_call.1} parent=0 // pred_check_branch
    %15 = sbr.rel (0) target = $region13
  $region12: #{tpu_custom_call.1} parent=0 // pred_region
    _
  $region13: #{tpu_custom_call.1} parent=0 // pred_fallthru
    _
  %v16 = vld [vmem:[%s3] sm:$0xff]
  %vm17 = vcmask 15360
  %v18 = vsel %vm17, %v16, 0
  %v19 = vrot.slane %v18, 4
  %v20 = vadd.s32 %v18, %v19
  %v21 = vrot.slane %v20, 2
  %v22 = vadd.s32 %v20, %v21
  %v23 = vrot.slane %v22, 1
  %v24 = vadd.s32 %v22, %v23
  %s25 = sld [smem:[#allocation4]]
  %v26 = vld [vmem:[%s2] sm:$0xff]
  %v27 = vld [vmem:[%s2 + $0x8] sm:$0xff]
  %v28 = vld [vmem:[%s2 + $0x10] sm:$0xff]
  %v29 = vld [vmem:[%s2 + $0x18] sm:$0xff]
  %v30 = vld [vmem:[%s2 + $0x20] sm:$0xff]
  %v31 = vld [vmem:[%s2 + $0x28] sm:$0xff]
  %v32 = vld [vmem:[%s2 + $0x30] sm:$0xff]
  %v33 = vld [vmem:[%s2 + $0x38] sm:$0xff]
  %v34 = vld [vmem:[%s1] sm:$0xff]
  %36 = vset.pattern.permute.xlu0 0
  %37 = vperm.xlu0 %36, %v32
  %v38 = vpop.permute.xlu0 %37
  %v40 = vadd.f32 %v34, %v38
  %vm41 = vcmp.eq.s32.totalorder %v24, 1
  %v42 = vsel %vm41, 1, 0
  %vm43 = vcmp.eq.s32.totalorder %v42, 1
  %v44 = vsel %vm43, %v40, 0.0
  // While loop
  $region14: #{tpu_custom_call.1} parent=0 // loop_pre_header
    _
  $region15: #{tpu_custom_call.1} parent=0 // loop_header
    %s46 = sphi 1, %s48
    %p47 = scmp.ge.s32.totalorder %s46, %s25
    %v51 = vphi %v40, %v152
    %v52 = vphi %v44, %v172
  $region16: #{tpu_custom_call.1} parent=0 // loop_header_branch
    %50 = sbr.rel (%p47) target = $region20
  $region17: #{tpu_custom_call.1} parent=0 // loop_body
    %54 = vset.pattern.permute.xlu0 0
    %55 = vperm.xlu0 %54, %v26
    %v56 = vpop.permute.xlu0 %55
    %v58 = vlaneseq
    %v59 = vshrl.u32 %v58, 7
    %v60 = vsub.s32 0, %v59
    %v61 = vrot.slane %v51, %v60
    %v62 = vadd.f32 %v56, %v61
    %64 = vset.pattern.permute.xlu0 0
    %65 = vperm.xlu0 %64, %v27
    %v66 = vpop.permute.xlu0 %65
    %v68 = vlaneseq
    %v69 = vshrl.u32 %v68, 7
    %v70 = vsub.s32 1, %v69
    %v71 = vrot.slane %v51, %v70
    %v72 = vadd.f32 %v66, %v71
    %vm73 = vcmp.gt.f32.partialorder %v72, %v62
    %v74 = vsel %vm73, %v72, %v62
    %v75 = vsel %vm73, 1, 0
    %77 = vset.pattern.permute.xlu0 0
    %78 = vperm.xlu0 %77, %v28
    %v79 = vpop.permute.xlu0 %78
    %v81 = vlaneseq
    %v82 = vshrl.u32 %v81, 7
    %v83 = vsub.s32 2, %v82
    %v84 = vrot.slane %v51, %v83
    %v85 = vadd.f32 %v79, %v84
    %vm86 = vcmp.gt.f32.partialorder %v85, %v74
    %v87 = vsel %vm86, %v85, %v74
    %v88 = vsel %vm86, 2, %v75
    %90 = vset.pattern.permute.xlu0 0
    %91 = vperm.xlu0 %90, %v29
    %v92 = vpop.permute.xlu0 %91
    %v94 = vlaneseq
    %v95 = vshrl.u32 %v94, 7
    %v96 = vsub.s32 3, %v95
    %v97 = vrot.slane %v51, %v96
    %v98 = vadd.f32 %v92, %v97
    %vm99 = vcmp.gt.f32.partialorder %v98, %v87
    %v100 = vsel %vm99, %v98, %v87
    %v101 = vsel %vm99, 3, %v88
    %103 = vset.pattern.permute.xlu0 0
    %104 = vperm.xlu0 %103, %v30
    %v105 = vpop.permute.xlu0 %104
    %v107 = vlaneseq
    %v108 = vshrl.u32 %v107, 7
    %v109 = vsub.s32 4, %v108
    %v110 = vrot.slane %v51, %v109
    %v111 = vadd.f32 %v105, %v110
    %vm112 = vcmp.gt.f32.partialorder %v111, %v100
    %v113 = vsel %vm112, %v111, %v100
    %v114 = vsel %vm112, 4, %v101
    %116 = vset.pattern.permute.xlu0 0
    %117 = vperm.xlu0 %116, %v31
    %v118 = vpop.permute.xlu0 %117
    %v120 = vlaneseq
    %v121 = vshrl.u32 %v120, 7
    %v122 = vsub.s32 5, %v121
    %v123 = vrot.slane %v51, %v122
    %v124 = vadd.f32 %v118, %v123
    %vm125 = vcmp.gt.f32.partialorder %v124, %v113
    %v126 = vsel %vm125, %v124, %v113
    %v127 = vsel %vm125, 5, %v114
    %v128 = vlaneseq
    %v129 = vshrl.u32 %v128, 7
    %v130 = vsub.s32 6, %v129
    %v131 = vrot.slane %v51, %v130
    %v132 = vadd.f32 %v38, %v131
    %vm133 = vcmp.gt.f32.partialorder %v132, %v126
    %v134 = vsel %vm133, %v132, %v126
    %v135 = vsel %vm133, 6, %v127
    %137 = vset.pattern.permute.xlu0 0
    %138 = vperm.xlu0 %137, %v33
    %v139 = vpop.permute.xlu0 %138
    %v141 = vlaneseq
    %v142 = vshrl.u32 %v141, 7
    %v143 = vsub.s32 7, %v142
    %v144 = vrot.slane %v51, %v143
    %v145 = vadd.f32 %v139, %v144
    %vm146 = vcmp.gt.f32.partialorder %v145, %v134
    %v147 = vsel %vm146, %v145, %v134
    %v148 = vsel %vm146, 7, %v135
    %s149 = smul.u32 %s46, 8
    %s150 = scalar_lea.vmem %s1, %s149
    %v151 = vld [vmem:[%s150] sm:$0xff]
    %v152 = vadd.f32 %v151, %v147
    %s153 = scalar_lea.vmem %s3, %s46
    %v154 = vld [vmem:[%s153] sm:$0x1]
    %vm155 = vcmp.gt.s32.totalorder %v154, 0
    %v156 = vsel %vm155, 1, 0
    %v157 = vlaneseq
    %v158 = vshrl.u32 %v157, 7
    %v159 = vsub.s32 0, %v158
    %v160 = vrot.slane %v156, %v159
    %vm161 = vcmp.eq.s32.totalorder %v160, 1
    %v162 = vsel %vm161, %v148, 0
    %s163 = ssub.s32 %s46, 1
    %s164 = smul.u32 %s163, 8
    %s165 = scalar_lea.vmem [#allocation2], %s164
    %166 = vst.msk [vmem:[%s165] sm:$0xff] %vm17, %v162
    %v167 = vsub.s32 %v24, 1
    %v168 = vstv %s46
    %vm169 = vcmp.eq.s32.totalorder %v167, %v168
    %v170 = vsel %vm169, 1, 0
    %vm171 = vcmp.eq.s32.totalorder %v170, 1
    %v172 = vsel %vm171, %v152, %v52
  $region18: #{tpu_custom_call.1} parent=0 // loop_footer
    %s48 = sadd.s32 %s46, 1
  $region19: #{tpu_custom_call.1} parent=0 // loop_footer_branch
    %45 = sbr.rel target = $region15
  $region20: #{tpu_custom_call.1} parent=0 // loop_exit
    _
  %s173 = ssub.s32 %s25, 1
  %p174 = scmp.gt.s32.totalorder %s173, 0
  %s175 = scalar_select %p174, %s173, 0
  // While loop
  $region21: #{tpu_custom_call.1} parent=0 // loop_pre_header
    _
  $region22: #{tpu_custom_call.1} parent=0 // loop_header
    %s177 = sphi %s175, %s179
    %p178 = scmp.ge.s32.totalorder %s177, 7
  $region23: #{tpu_custom_call.1} parent=0 // loop_header_branch
    %181 = sbr.rel (%p178) target = $region27
  $region24: #{tpu_custom_call.1} parent=0 // loop_body
    %s182 = smul.u32 %s177, 8
    %s183 = scalar_lea.vmem [#allocation2], %s182
    %184 = vst.msk [vmem:[%s183] sm:$0xff] %vm17, 0
  $region25: #{tpu_custom_call.1} parent=0 // loop_footer
    %s179 = sadd.s32 %s177, 1
  $region26: #{tpu_custom_call.1} parent=0 // loop_footer_branch
    %176 = sbr.rel target = $region22
  $region27: #{tpu_custom_call.1} parent=0 // loop_exit
    _
  %186 = vset.pattern.permute.xlu0 0
  %187 = vperm.xlu0 %186, %v26
  %v188 = vpop.permute.xlu0 %187
  %v189 = vrot.slane %v188, 7
  %v191 = vadd.f32 %v52, %v189
  %193 = vset.pattern.permute.xlu0 0
  %194 = vperm.xlu0 %193, %v27
  %v195 = vpop.permute.xlu0 %194
  %v196 = vrot.slane %v195, 6
  %v198 = vadd.f32 %v52, %v196
  %v200 = vrot.slane %v191, 7
  %vm202 = vcmp.gt.f32.partialorder %v198, %v200
  %v203 = vsel %vm202, %v198, %v200
  %v204 = vsel %vm202, 1, 0
  %206 = vset.pattern.permute.xlu0 0
  %207 = vperm.xlu0 %206, %v28
  %v208 = vpop.permute.xlu0 %207
  %v209 = vrot.slane %v208, 5
  %v211 = vadd.f32 %v52, %v209
  %v213 = vrot.slane %v203, 7
  %vm215 = vcmp.gt.f32.partialorder %v211, %v213
  %v216 = vsel %vm215, %v211, %v213
  %v217 = vrot.slane %v204, 7
  %v218 = vsel %vm215, 2, %v217
  %220 = vset.pattern.permute.xlu0 0
  %221 = vperm.xlu0 %220, %v29
  %v222 = vpop.permute.xlu0 %221
  %v223 = vrot.slane %v222, 4
  %v225 = vadd.f32 %v52, %v223
  %v227 = vrot.slane %v216, 7
  %vm229 = vcmp.gt.f32.partialorder %v225, %v227
  %v230 = vsel %vm229, %v225, %v227
  %v231 = vrot.slane %v218, 7
  %v232 = vsel %vm229, 3, %v231
  %234 = vset.pattern.permute.xlu0 0
  %235 = vperm.xlu0 %234, %v30
  %v236 = vpop.permute.xlu0 %235
  %v237 = vrot.slane %v236, 3
  %v239 = vadd.f32 %v52, %v237
  %v241 = vrot.slane %v230, 7
  %vm243 = vcmp.gt.f32.partialorder %v239, %v241
  %v244 = vsel %vm243, %v239, %v241
  %v245 = vrot.slane %v232, 7
  %v246 = vsel %vm243, 4, %v245
  %248 = vset.pattern.permute.xlu0 0
  %249 = vperm.xlu0 %248, %v31
  %v250 = vpop.permute.xlu0 %249
  %v251 = vrot.slane %v250, 2
  %v253 = vadd.f32 %v52, %v251
  %v255 = vrot.slane %v244, 7
  %vm257 = vcmp.gt.f32.partialorder %v253, %v255
  %v258 = vsel %vm257, %v253, %v255
  %v259 = vrot.slane %v246, 7
  %v260 = vsel %vm257, 5, %v259
  %v261 = vrot.slane %v38, 1
  %v263 = vadd.f32 %v52, %v261
  %v265 = vrot.slane %v258, 7
  %vm267 = vcmp.gt.f32.partialorder %v263, %v265
  %v268 = vsel %vm267, %v263, %v265
  %v269 = vrot.slane %v260, 7
  %v270 = vsel %vm267, 6, %v269
  %272 = vset.pattern.permute.xlu0 0
  %273 = vperm.xlu0 %272, %v33
  %v274 = vpop.permute.xlu0 %273
  %v276 = vadd.f32 %v52, %v274
  %v278 = vrot.slane %v268, 7
  %vm280 = vcmp.gt.f32.partialorder %v276, %v278
  %v281 = vrot.slane %v270, 7
  %v282 = vsel %vm280, 7, %v281
  %v283 = vlaneseq
  %v284 = vshrl.u32 %v283, 7
  %s285 = scalar_lea.vmem %s4, 7
  %vm286 = vcmask 15367
  %287 = vst.msk [vmem:[%s285 - $0x7] sm:$0x80] %vm286, %v282
  loop: start=0, step=1, limit=7
  $region28: #{tpu_custom_call.1} parent=0 // loop_pre_header
    _
  $region29: #{tpu_custom_call.1} parent=0 // loop_header
    %s289 = sphi 0, %s293
    %p290 = scmp.ge.s32.totalorder %s289, 7
    %v294 = vphi %v282, %v321
  $region30: #{tpu_custom_call.1} parent=0 // loop_header_branch
    %292 = sbr.rel (%p290) target = $region34
  $region31: #{tpu_custom_call.1} parent=0 // loop_body
    %s295 = ssub.s32 6, %s289
    %s296 = smul.u32 %s295, 8
    %s297 = scalar_lea.vmem [#allocation2], %s296
    %v298 = vld [vmem:[%s297] sm:$0xff]
    %v299 = vsub.s32 %v24, 1
    %v300 = vstv %s295
    %vm301 = vcmp.eq.s32.totalorder %v299, %v300
    %v302 = vsel %vm301, 1, 0
    %vm303 = vcmp.eq.s32.totalorder %v302, 1
    %v304 = vlaneseq
    %v305 = vshrl.u32 %v304, 7
    %v306 = vsub.s32 7, %v305
    %v307 = vrot.slane %v282, %v306
    %v308 = vsel %vm303, %v307, %v298
    %v309 = vlaneseq
    %v310 = vshrl.u32 %v309, 7
    %v311 = vsub.s32 7, %v310
    %v312 = vrot.slane %v294, %v311
    %vm313 = vcmp.eq.s32.totalorder %v284, %v312
    %v314 = vsel %vm313, %v308, 0
    %v315 = vsel %vm17, %v314, 0
    %v316 = vrot.slane %v315, 4
    %v317 = vadd.s32 %v315, %v316
    %v318 = vrot.slane %v317, 2
    %v319 = vadd.s32 %v317, %v318
    %v320 = vrot.slane %v319, 1
    %v321 = vadd.s32 %v319, %v320
    %s322 = scalar_lea.vmem %s4, %s295
    %vm323 = vcmask 8192
    %324 = vst.msk [vmem:[%s322] sm:$0x1] %vm323, %v321
  $region32: #{tpu_custom_call.1} parent=0 // loop_footer
    %s293 = sadd.s32 1, %s289
  $region33: #{tpu_custom_call.1} parent=0 // loop_footer_branch
    %288 = sbr.rel target = $region29
  $region34: #{tpu_custom_call.1} parent=0 // loop_exit
    _
  // Predicated region
  $region35: #{tpu_custom_call.1} parent=0 // pred_check
    _
  $region36: #{tpu_custom_call.1} parent=0 // pred_check_branch
    %326 = sbr.rel (0) target = $region38
  $region37: #{tpu_custom_call.1} parent=0 // pred_region
    _
  $region38: #{tpu_custom_call.1} parent=0 // pred_fallthru
    _
  // Predicated region
  $region39: #{tpu_custom_call.1} parent=0 // pred_check
    _
  $region40: #{tpu_custom_call.1} parent=0 // pred_check_branch
    %328 = sbr.rel (0) target = $region42
  $region41: #{tpu_custom_call.1} parent=0 // pred_region
    _
  $region42: #{tpu_custom_call.1} parent=0 // pred_fallthru
    _

</llo_original>
